<compile_context>
chip_gen: v6e
topology: v6e:2x2x1
jax: 0.10.0
libtpu: 0.0.40
codegen_flags: <defaults>
</compile_context>

<pallas_src>
import functools

import jax
import jax.numpy as jnp
from jax import lax
from jax.experimental import pallas as pl
from jax.experimental.pallas import tpu as pltpu

_LANES = 128
_SUBLANES = 8
_TARGET_TILE_BYTES = 2 * 1024 * 1024   # per input, per pipeline buffer
_MAX_CHUNK_ROWS = 64                   # rows per inner fori_loop step


def _round_up(a, b):
    return ((a + b - 1) // b) * b


def _pick_chunk_rows(rows):
    if rows <= _MAX_CHUNK_ROWS:
        return rows
    if rows % _MAX_CHUNK_ROWS == 0:
        return _MAX_CHUNK_ROWS
    return _SUBLANES  # rows is always a multiple of 8


def _corr_kernel(pivot_ref, x_ref, y_ref, o_ref, acc_ref, *, chunk_rows):
    """One grid step over a (block_rows, 128) tile of x and y.

    pivot_ref : SMEM (2,) f32  [pivot_x, pivot_y]
    acc_ref   : VMEM (5, 8, 128) f32 accumulators of the *shifted* moments
                [Σx', Σy', Σx'y', Σx'², Σy'²] with x' = x - pivot_x, etc.
    o_ref     : (1, 5, 8, 128) per-parallel-block output, written once.
    """
    j = pl.program_id(1)

    @pl.when(j == 0)
    def _init():
        acc_ref[...] = jnp.zeros_like(acc_ref)

    px = pivot_ref[0]
    py = pivot_ref[1]

    n_chunks = x_ref.shape[0] // chunk_rows  # static

    def fold(v):
        # (chunk_rows,128) -> (8,128): tile-aligned reshape + leading-axis sum
        # (pure VALU vreg adds, no XLU traffic).
        return jnp.sum(v.reshape(-1, _SUBLANES, _LANES), axis=0)

    def body(c, carry):
        sx, sy, sxy, sxx, syy = carry
        off = pl.multiple_of(c * chunk_rows, chunk_rows)
        xv = x_ref[pl.ds(off, chunk_rows), :].astype(jnp.float32) - px
        yv = y_ref[pl.ds(off, chunk_rows), :].astype(jnp.float32) - py
        return (sx + fold(xv), sy + fold(yv), sxy + fold(xv * yv),
                sxx + fold(xv * xv), syy + fold(yv * yv))

    zero = jnp.zeros((_SUBLANES, _LANES), jnp.float32)
    sx, sy, sxy, sxx, syy = lax.fori_loop(
        0, n_chunks, body, (zero, zero, zero, zero, zero))

    acc_ref[0] += sx
    acc_ref[1] += sy
    acc_ref[2] += sxy
    acc_ref[3] += sxx
    acc_ref[4] += syy

    @pl.when(j == pl.num_programs(1) - 1)
    def _finalize():
        o_ref[0] = acc_ref[...]


def _corr(output, target, *, block_rows=None):
    """Pearson correlation of two arrays with identical shape (any shape)."""
    x = jnp.asarray(output)
    y = jnp.asarray(target)
    assert x.shape == y.shape, "output and target must have the same shape"
    n = x.size
    assert n > 0

    xf = x.reshape(-1)
    yf = y.reshape(-1)

    # Cheap pivot (numerical conditioning). Rounded to the input dtype so that
    # pivot-valued padding cancels to exactly 0 inside the kernel.
    m = min(n, _SUBLANES * _LANES)
    px = jnp.mean(xf[:m].astype(jnp.float32)).astype(x.dtype)
    py = jnp.mean(yf[:m].astype(jnp.float32)).astype(y.dtype)
    px32 = px.astype(jnp.float32)
    py32 = py.astype(jnp.float32)
    pivots = jnp.stack([px32, py32])  # (2,) f32 -> SMEM input

    # Lane-align only if needed (pads contribute exactly 0 after pivot shift).
    rem = n % _LANES
    if rem:
        padl = _LANES - rem
        xf = jnp.pad(xf, (0, padl), constant_values=px)
        yf = jnp.pad(yf, (0, padl), constant_values=py)
    rows = xf.size // _LANES
    x2d = xf.reshape(rows, _LANES)
    y2d = yf.reshape(rows, _LANES)

    # Tile rows: constant bytes per grid step regardless of dtype.
    itemsize = x.dtype.itemsize
    br = _TARGET_TILE_BYTES // (_LANES * itemsize) if block_rows is None else block_rows
    br = max(_MAX_CHUNK_ROWS, _round_up(int(br), _MAX_CHUNK_ROWS))

    num_tiles = rows // br
    x_tail = y_tail = None
    if num_tiles == 0:
        # Small input: one tile holding everything (cheap pivot-valued row pad).
        br = _round_up(rows, _SUBLANES)
        if br > rows:
            x2d = jnp.pad(x2d, ((0, br - rows), (0, 0)), constant_values=px)
            y2d = jnp.pad(y2d, ((0, br - rows), (0, 0)), constant_values=py)
        num_par, tiles_per_par = 1, 1
    else:
        # Leading parallel axis: used by both TensorCores on v7x, harmlessly
        # serialized on v5e/v6e.
        if num_tiles >= 2 and (num_tiles % 2 == 0 or num_tiles >= 6):
            num_par = 2
        else:
            num_par = 1
        num_tiles = (num_tiles // num_par) * num_par
        tiles_per_par = num_tiles // num_par
        main_rows = num_tiles * br
        if main_rows < rows:
            # Row tail (< 2 tiles): folded in below with a tiny jnp reduction —
            # no full-array pad/copy for the streamed part.
            x_tail = x2d[main_rows:]
            y_tail = y2d[main_rows:]

    chunk_rows = _pick_chunk_rows(br)
    grid = (num_par, tiles_per_par)

    in_specs = [
        pl.BlockSpec(memory_space=pltpu.MemorySpace.SMEM),   # pivots (2,)
        pl.BlockSpec((br, _LANES), lambda i, j: (i * tiles_per_par + j, 0)),
        pl.BlockSpec((br, _LANES), lambda i, j: (i * tiles_per_par + j, 0)),
    ]
    out_spec = pl.BlockSpec((1, 5, _SUBLANES, _LANES), lambda i, j: (i, 0, 0, 0))

    tile_bytes = br * _LANES * itemsize
    vmem_limit = int(min(64 * 1024 * 1024,
                         max(32 * 1024 * 1024, 4 * tile_bytes + (2 << 20))))

    parts = pl.pallas_call(
        functools.partial(_corr_kernel, chunk_rows=chunk_rows),
        out_shape=jax.ShapeDtypeStruct((num_par, 5, _SUBLANES, _LANES),
                                       jnp.float32),
        grid=grid,
        in_specs=in_specs,
        out_specs=out_spec,
        scratch_shapes=[pltpu.VMEM((5, _SUBLANES, _LANES), jnp.float32)],
        compiler_params=pltpu.CompilerParams(
            dimension_semantics=("parallel", "arbitrary"),
            vmem_limit_bytes=vmem_limit),
    )(pivots, x2d, y2d)

    moments = jnp.sum(parts, axis=(0, 2, 3))  # (5,) shifted moments

    if x_tail is not None:
        xs = x_tail.astype(jnp.float32) - px32
        ys = y_tail.astype(jnp.float32) - py32
        tail = jnp.stack([jnp.sum(xs), jnp.sum(ys), jnp.sum(xs * ys),
                          jnp.sum(xs * xs), jnp.sum(ys * ys)])
        moments = moments + tail

    sx, sy, sxy, sxx, syy = (moments[k] for k in range(5))
    inv_n = 1.0 / float(n)  # exact host-side reciprocal
    num = sxy - sx * sy * inv_n
    var_x = sxx - sx * sx * inv_n
    var_y = syy - sy * sy * inv_n
    # NOTE: constant input -> var == 0 -> NaN/Inf, same as the PyTorch forward
    # (its eps member is unused there).
    return num / (jnp.sqrt(var_x) * jnp.sqrt(var_y))


corr = jax.jit(_corr, static_argnames=("block_rows",))


def _corr_ref(x, y):
    x = x.astype(jnp.float32)
    y = y.astype(jnp.float32)
    vx = x - jnp.mean(x)
    vy = y - jnp.mean(y)
    return jnp.sum(vx * vy) / (jnp.sqrt(jnp.sum(vx ** 2)) * jnp.sqrt(jnp.sum(vy ** 2)))


if __name__ == "__main__":
    key = jax.random.PRNGKey(0)
    k1, k2, k3, k4, k5, k6 = jax.random.split(key, 6)

    # 1) NCHW float32, lane-aligned element count (2*4*16*16 = 2048 = 16*128)
    x = jax.random.normal(k1, (2, 4, 16, 16), dtype=jnp.float32)
    y = 0.7 * x + 0.3 * jax.random.normal(k2, (2, 4, 16, 16), dtype=jnp.float32)
    got = jax.block_until_ready(corr(x, y))
    ref = _corr_ref(x, y)
    assert jnp.allclose(got, ref, atol=1e-4, rtol=1e-4), (got, ref)

    # 2) element count not divisible by 128 -> exercises the lane-pad path
    x3 = jax.random.normal(k3, (3, 5, 7, 11), dtype=jnp.float32)
    y3 = 0.5 * x3 + 0.5 * jax.random.normal(k4, (3, 5, 7, 11), dtype=jnp.float32)
    got3 = jax.block_until_ready(corr(x3, y3))
    ref3 = _corr_ref(x3, y3)
    assert jnp.allclose(got3, ref3, atol=1e-4, rtol=1e-4), (got3, ref3)

    # 3) bf16 inputs stream in native dtype (half the HBM bytes), f32 accumulate
    xb = x.astype(jnp.bfloat16)
    yb = y.astype(jnp.bfloat16)
    gotb = jax.block_until_ready(corr(xb, yb))
    refb = _corr_ref(xb, yb)
    assert jnp.allclose(gotb, refb, atol=2e-3, rtol=2e-3), (gotb, refb)

    # 4) multi-tile + dual-parallel-block + wrapper tail path (small block_rows
    #    to exercise it at small sizes), with a large common mean to check the
    #    pivot conditioning: n = 2*4*64*66 = 33792 -> 264 rows -> 4 tiles of 64
    #    rows split across 2 parallel blocks + an 8-row tail.
    x4 = 100.0 + jax.random.normal(k5, (2, 4, 64, 66), dtype=jnp.float32)
    y4 = 100.0 + 0.6 * (x4 - 100.0) + 0.4 * jax.random.normal(
        k6, (2, 4, 64, 66), dtype=jnp.float32)
    got4 = jax.block_until_ready(corr(x4, y4, block_rows=64))
    ref4 = _corr_ref(x4, y4)
    assert jnp.allclose(got4, ref4, atol=1e-3, rtol=1e-3), (got4, ref4)

    print("KERNEL_OK")
</pallas_src>

<mosaic_0001>
module attributes {stable_mosaic.version = 11 : i64} {
  func.func @_corr_kernel(%arg0: i32, %arg1: i32, %arg2: memref<2xf32, #tpu.memory_space<smem>>, %arg3: memref<16x128xf32, #tpu.memory_space<vmem>>, %arg4: memref<16x128xf32, #tpu.memory_space<vmem>>, %arg5: memref<1x5x8x128xf32, #tpu.memory_space<vmem>>, %arg6: memref<5x8x128xf32, #tpu.memory_space<vmem>>) attributes {dimension_semantics = [#tpu.dimension_semantics<parallel>, #tpu.dimension_semantics<arbitrary>], iteration_bounds = array<i64: 1, 1>, scalar_prefetch = 0 : i64, scratch_operands = 1 : i64, tpu.core_type = #tpu.core_type<tc>, window_params = [{transform_indices = @transform_0, window_bounds = array<i64: 2>}, {transform_indices = @transform_1, window_bounds = array<i64: 16, 128>}, {transform_indices = @transform_2, window_bounds = array<i64: 16, 128>}, {transform_indices = @transform_3, window_bounds = array<i64: 1, 5, 8, 128>}]} {
    %c0_i32 = arith.constant 0 : i32
    %0 = arith.cmpi eq, %arg1, %c0_i32 : i32
    %1 = arith.extui %0 : i1 to i32
    %c0_i32_0 = arith.constant 0 : i32
    %2 = arith.cmpi ne, %1, %c0_i32_0 : i32
    scf.if %2 {
      %cst_38 = arith.constant 0.000000e+00 : f32
      %67 = vector.broadcast %cst_38 : f32 to vector<5x8x128xf32>
      %c0_39 = arith.constant 0 : index
      %c0_40 = arith.constant 0 : index
      %c0_41 = arith.constant 0 : index
      %68 = vector.load %arg6[%c0_39, %c0_40, %c0_41] : memref<5x8x128xf32, #tpu.memory_space<vmem>>, vector<5x8x128xf32>
      tpu.vector_store %arg6[%c0_39, %c0_40, %c0_41], %67 {strides = array<i32>} : memref<5x8x128xf32, #tpu.memory_space<vmem>>, vector<5x8x128xf32>,
    } else {
    }
    %c0 = arith.constant 0 : index
    %3 = memref.load %arg2[%c0] : memref<2xf32, #tpu.memory_space<smem>>
    %c1 = arith.constant 1 : index
    %4 = memref.load %arg2[%c1] : memref<2xf32, #tpu.memory_space<smem>>
    %cst = arith.constant 0.000000e+00 : f32
    %5 = vector.broadcast %cst : f32 to vector<8x128xf32>
    %c0_i32_1 = arith.constant 0 : i32
    %c16_i32 = arith.constant 16 : i32
    %6 = arith.muli %c0_i32_1, %c16_i32 : i32
    %7 = tpu.assume_multiple %6, 16 : i32
    %8 = arith.index_cast %7 : i32 to index
    %c0_2 = arith.constant 0 : index
    %9 = vector.load %arg3[%8, %c0_2] : memref<16x128xf32, #tpu.memory_space<vmem>>, vector<16x128xf32>
    %10 = vector.broadcast %3 : f32 to vector<16x128xf32>
    %11 = arith.subf %9, %10 : vector<16x128xf32>
    %12 = arith.index_cast %7 : i32 to index
    %c0_3 = arith.constant 0 : index
    %13 = vector.load %arg4[%12, %c0_3] : memref<16x128xf32, #tpu.memory_space<vmem>>, vector<16x128xf32>
    %14 = vector.broadcast %4 : f32 to vector<16x128xf32>
    %15 = arith.subf %13, %14 : vector<16x128xf32>
    %16 = vector.shape_cast %11 : vector<16x128xf32> to vector<2x8x128xf32>
    %cst_4 = arith.constant dense<0.000000e+00> : vector<8x128xf32>
    %17 = vector.multi_reduction <add>, %16, %cst_4 [0] : vector<2x8x128xf32> to vector<8x128xf32>
    %18 = arith.addf %5, %17 : vector<8x128xf32>
    %19 = vector.shape_cast %15 : vector<16x128xf32> to vector<2x8x128xf32>
    %cst_5 = arith.constant dense<0.000000e+00> : vector<8x128xf32>
    %20 = vector.multi_reduction <add>, %19, %cst_5 [0] : vector<2x8x128xf32> to vector<8x128xf32>
    %21 = arith.addf %5, %20 : vector<8x128xf32>
    %22 = arith.mulf %11, %15 : vector<16x128xf32>
    %23 = vector.shape_cast %22 : vector<16x128xf32> to vector<2x8x128xf32>
    %cst_6 = arith.constant dense<0.000000e+00> : vector<8x128xf32>
    %24 = vector.multi_reduction <add>, %23, %cst_6 [0] : vector<2x8x128xf32> to vector<8x128xf32>
    %25 = arith.addf %5, %24 : vector<8x128xf32>
    %26 = arith.mulf %11, %11 : vector<16x128xf32>
    %27 = vector.shape_cast %26 : vector<16x128xf32> to vector<2x8x128xf32>
    %cst_7 = arith.constant dense<0.000000e+00> : vector<8x128xf32>
    %28 = vector.multi_reduction <add>, %27, %cst_7 [0] : vector<2x8x128xf32> to vector<8x128xf32>
    %29 = arith.addf %5, %28 : vector<8x128xf32>
    %30 = arith.mulf %15, %15 : vector<16x128xf32>
    %31 = vector.shape_cast %30 : vector<16x128xf32> to vector<2x8x128xf32>
    %cst_8 = arith.constant dense<0.000000e+00> : vector<8x128xf32>
    %32 = vector.multi_reduction <add>, %31, %cst_8 [0] : vector<2x8x128xf32> to vector<8x128xf32>
    %33 = arith.addf %5, %32 : vector<8x128xf32>
    %c1_i32 = arith.constant 1 : i32
    %c0_9 = arith.constant 0 : index
    %c0_10 = arith.constant 0 : index
    %c0_11 = arith.constant 0 : index
    %34 = vector.load %arg6[%c0_9, %c0_10, %c0_11] : memref<5x8x128xf32, #tpu.memory_space<vmem>>, vector<1x8x128xf32>
    %35 = vector.shape_cast %34 : vector<1x8x128xf32> to vector<8x128xf32>
    %36 = arith.addf %35, %18 : vector<8x128xf32>
    %c0_12 = arith.constant 0 : index
    %c0_13 = arith.constant 0 : index
    %c0_14 = arith.constant 0 : index
    %37 = vector.load %arg6[%c0_12, %c0_13, %c0_14] : memref<5x8x128xf32, #tpu.memory_space<vmem>>, vector<1x8x128xf32>
    %38 = vector.shape_cast %37 : vector<1x8x128xf32> to vector<8x128xf32>
    %39 = vector.shape_cast %36 : vector<8x128xf32> to vector<1x8x128xf32>
    tpu.vector_store %arg6[%c0_12, %c0_13, %c0_14], %39 {strides = array<i32>} : memref<5x8x128xf32, #tpu.memory_space<vmem>>, vector<1x8x128xf32>,
    %c1_15 = arith.constant 1 : index
    %c0_16 = arith.constant 0 : index
    %c0_17 = arith.constant 0 : index
    %40 = vector.load %arg6[%c1_15, %c0_16, %c0_17] : memref<5x8x128xf32, #tpu.memory_space<vmem>>, vector<1x8x128xf32>
    %41 = vector.shape_cast %40 : vector<1x8x128xf32> to vector<8x128xf32>
    %42 = arith.addf %41, %21 : vector<8x128xf32>
    %c1_18 = arith.constant 1 : index
    %c0_19 = arith.constant 0 : index
    %c0_20 = arith.constant 0 : index
    %43 = vector.load %arg6[%c1_18, %c0_19, %c0_20] : memref<5x8x128xf32, #tpu.memory_space<vmem>>, vector<1x8x128xf32>
    %44 = vector.shape_cast %43 : vector<1x8x128xf32> to vector<8x128xf32>
    %45 = vector.shape_cast %42 : vector<8x128xf32> to vector<1x8x128xf32>
    tpu.vector_store %arg6[%c1_18, %c0_19, %c0_20], %45 {strides = array<i32>} : memref<5x8x128xf32, #tpu.memory_space<vmem>>, vector<1x8x128xf32>,
    %c2 = arith.constant 2 : index
    %c0_21 = arith.constant 0 : index
    %c0_22 = arith.constant 0 : index
    %46 = vector.load %arg6[%c2, %c0_21, %c0_22] : memref<5x8x128xf32, #tpu.memory_space<vmem>>, vector<1x8x128xf32>
    %47 = vector.shape_cast %46 : vector<1x8x128xf32> to vector<8x128xf32>
    %48 = arith.addf %47, %25 : vector<8x128xf32>
    %c2_23 = arith.constant 2 : index
    %c0_24 = arith.constant 0 : index
    %c0_25 = arith.constant 0 : index
    %49 = vector.load %arg6[%c2_23, %c0_24, %c0_25] : memref<5x8x128xf32, #tpu.memory_space<vmem>>, vector<1x8x128xf32>
    %50 = vector.shape_cast %49 : vector<1x8x128xf32> to vector<8x128xf32>
    %51 = vector.shape_cast %48 : vector<8x128xf32> to vector<1x8x128xf32>
    tpu.vector_store %arg6[%c2_23, %c0_24, %c0_25], %51 {strides = array<i32>} : memref<5x8x128xf32, #tpu.memory_space<vmem>>, vector<1x8x128xf32>,
    %c3 = arith.constant 3 : index
    %c0_26 = arith.constant 0 : index
    %c0_27 = arith.constant 0 : index
    %52 = vector.load %arg6[%c3, %c0_26, %c0_27] : memref<5x8x128xf32, #tpu.memory_space<vmem>>, vector<1x8x128xf32>
    %53 = vector.shape_cast %52 : vector<1x8x128xf32> to vector<8x128xf32>
    %54 = arith.addf %53, %29 : vector<8x128xf32>
    %c3_28 = arith.constant 3 : index
    %c0_29 = arith.constant 0 : index
    %c0_30 = arith.constant 0 : index
    %55 = vector.load %arg6[%c3_28, %c0_29, %c0_30] : memref<5x8x128xf32, #tpu.memory_space<vmem>>, vector<1x8x128xf32>
    %56 = vector.shape_cast %55 : vector<1x8x128xf32> to vector<8x128xf32>
    %57 = vector.shape_cast %54 : vector<8x128xf32> to vector<1x8x128xf32>
    tpu.vector_store %arg6[%c3_28, %c0_29, %c0_30], %57 {strides = array<i32>} : memref<5x8x128xf32, #tpu.memory_space<vmem>>, vector<1x8x128xf32>,
    %c4 = arith.constant 4 : index
    %c0_31 = arith.constant 0 : index
    %c0_32 = arith.constant 0 : index
    %58 = vector.load %arg6[%c4, %c0_31, %c0_32] : memref<5x8x128xf32, #tpu.memory_space<vmem>>, vector<1x8x128xf32>
    %59 = vector.shape_cast %58 : vector<1x8x128xf32> to vector<8x128xf32>
    %60 = arith.addf %59, %33 : vector<8x128xf32>
    %c4_33 = arith.constant 4 : index
    %c0_34 = arith.constant 0 : index
    %c0_35 = arith.constant 0 : index
    %61 = vector.load %arg6[%c4_33, %c0_34, %c0_35] : memref<5x8x128xf32, #tpu.memory_space<vmem>>, vector<1x8x128xf32>
    %62 = vector.shape_cast %61 : vector<1x8x128xf32> to vector<8x128xf32>
    %63 = vector.shape_cast %60 : vector<8x128xf32> to vector<1x8x128xf32>
    tpu.vector_store %arg6[%c4_33, %c0_34, %c0_35], %63 {strides = array<i32>} : memref<5x8x128xf32, #tpu.memory_space<vmem>>, vector<1x8x128xf32>,
    %c0_i32_36 = arith.constant 0 : i32
    %64 = arith.cmpi eq, %arg1, %c0_i32_36 : i32
    %65 = arith.extui %64 : i1 to i32
    %c0_i32_37 = arith.constant 0 : i32
    %66 = arith.cmpi ne, %65, %c0_i32_37 : i32
    scf.if %66 {
      %c0_38 = arith.constant 0 : index
      %c0_39 = arith.constant 0 : index
      %c0_40 = arith.constant 0 : index
      %67 = vector.load %arg6[%c0_38, %c0_39, %c0_40] : memref<5x8x128xf32, #tpu.memory_space<vmem>>, vector<5x8x128xf32>
      %c0_41 = arith.constant 0 : index
      %c0_42 = arith.constant 0 : index
      %c0_43 = arith.constant 0 : index
      %c0_44 = arith.constant 0 : index
      %68 = vector.load %arg5[%c0_41, %c0_42, %c0_43, %c0_44] : memref<1x5x8x128xf32, #tpu.memory_space<vmem>>, vector<1x5x8x128xf32>
      %69 = vector.shape_cast %68 : vector<1x5x8x128xf32> to vector<5x8x128xf32>
      %70 = vector.shape_cast %67 : vector<5x8x128xf32> to vector<1x5x8x128xf32>
      tpu.vector_store %arg5[%c0_41, %c0_42, %c0_43, %c0_44], %70 {strides = array<i32>} : memref<1x5x8x128xf32, #tpu.memory_space<vmem>>, vector<1x5x8x128xf32>,
    } else {
    }
    return
  }
  func.func @transform_0(%arg0: i32, %arg1: i32) -> i32 {
    %c0_i32 = arith.constant 0 : i32
    %c0_i32_0 = arith.constant 0 : i32
    return %c0_i32 : i32
  }
  func.func @transform_1(%arg0: i32, %arg1: i32) -> (i32, i32) {
    %c1_i32 = arith.constant 1 : i32
    %0 = arith.muli %arg0, %c1_i32 : i32
    %1 = arith.addi %0, %arg1 : i32
    %c0_i32 = arith.constant 0 : i32
    %c0_i32_0 = arith.constant 0 : i32
    return %1, %c0_i32 : i32, i32
  }
  func.func @transform_2(%arg0: i32, %arg1: i32) -> (i32, i32) {
    %c1_i32 = arith.constant 1 : i32
    %0 = arith.muli %arg0, %c1_i32 : i32
    %1 = arith.addi %0, %arg1 : i32
    %c0_i32 = arith.constant 0 : i32
    %c0_i32_0 = arith.constant 0 : i32
    return %1, %c0_i32 : i32, i32
  }
  func.func @transform_3(%arg0: i32, %arg1: i32) -> (i32, i32, i32, i32) {
    %c0_i32 = arith.constant 0 : i32
    %c0_i32_0 = arith.constant 0 : i32
    %c0_i32_1 = arith.constant 0 : i32
    %c0_i32_2 = arith.constant 0 : i32
    return %arg0, %c0_i32, %c0_i32_0, %c0_i32_1 : i32, i32, i32, i32
  }
}

</mosaic_0001>

<llo_original>
// kernel: _corr.1
$region0: #{_corr.1}
  #allocation0 [shape = 'u32[]', space=smem, size = 0x4, offset = 0x4, fixed_abs, tag = 'smem constant byte address 0x4 - core index']
  #allocation1 [shape = 'u32[144,128]{1,0:T(1,128)}', space=vmem, size = 0x12000, scoped, tag = 'internal scratch']
  #allocation2 [shape = 'f32[5,8,128]{2,1,0:T(8,128)}', space=vmem, size = 0x5000, scoped, tag = 'scratch operand']
  %s0 = inlined_call_operand.vmem [shape: f32[2], index: 0, kind: input, shape index: {}]
  %s1 = inlined_call_operand.vmem [shape: f32[16,128], index: 1, kind: input, shape index: {}]
  %s2 = inlined_call_operand.vmem [shape: f32[16,128], index: 2, kind: input, shape index: {}]
  %s3 = inlined_call_operand.vmem [shape: f32[1,5,8,128], index: 3, kind: output, shape index: {}]
  %s4 = sld [smem:[#allocation0]]
  $region34: #{_corr.1} parent=0
    _
  %s6 = ssub.s32 1, %s4
  %s7 = scalar_select 0, %s6, %s4
  $region1: #{_corr.1} parent=0
    #allocation3 [shape = 'u8[512]{0}', space=smem, size = 0x200, scoped, tag = 'input window, operand 0, single buffered']
    #allocation4 [shape = 's32[1]{0}', space=sflag, size = 0x4, scoped, tag = 'scoped memory for _corr.1']
    %8 = vsyncpa [#allocation4], 0
    // Predicated region
    $region2: #{_corr.1} parent=1 // pred_check
      _
    $region3: #{_corr.1} parent=1 // pred_check_branch
      %10 = sbr.rel (0) target = $region5
    $region4: #{_corr.1} parent=1 // pred_region
      %s12 = ssub.s32 16, 16
      %13 = vsyncadd [#allocation4], %s12
      %s15 = sshll.u32 %s0, 4
      %s16 = int_to_ptr.vmem [resolvable:$true] %s15
      %18 = dma.vmem_to_smem %s16, 16, [#allocation3], [#allocation4]
    $region5: #{_corr.1} parent=1 // pred_fallthru
      _
    // Predicated region
    $region6: #{_corr.1} parent=1 // pred_check
      _
    $region7: #{_corr.1} parent=1 // pred_check_branch
      %20 = sbr.rel (0) target = $region9
    $region8: #{_corr.1} parent=1 // pred_region
      %s21 = sadd.s32 0, 0
      %s22 = smul.u32 2, %s21
      %p23 = scmp.lt.s32.totalorder %s22, 1
      %s24 = scalar_select %p23, %s22, 1
      %s25 = smul.addr %s24, 8
      %s26 = scalar_lea.vmem %s1, %s25
      %s27 = sadd.s32 0, 0
      %s28 = smul.u32 2, %s27
    $region9: #{_corr.1} parent=1 // pred_fallthru
      _
    // Predicated region
    $region10: #{_corr.1} parent=1 // pred_check
      _
    $region11: #{_corr.1} parent=1 // pred_check_branch
      %30 = sbr.rel (0) target = $region13
    $region12: #{_corr.1} parent=1 // pred_region
      %s31 = sadd.s32 0, 0
      %s32 = smul.u32 2, %s31
      %p33 = scmp.lt.s32.totalorder %s32, 1
      %s34 = scalar_select %p33, %s32, 1
      %s35 = smul.addr %s34, 8
      %s36 = scalar_lea.vmem %s2, %s35
      %s37 = sadd.s32 0, 0
      %s38 = smul.u32 2, %s37
    $region13: #{_corr.1} parent=1 // pred_fallthru
      _
    // Predicated region
    $region14: #{_corr.1} parent=1 // pred_check
      _
    $region15: #{_corr.1} parent=1 // pred_check_branch
      %40 = sbr.rel (0) target = $region17
    $region16: #{_corr.1} parent=1 // pred_region
      %41 = dma.done [#allocation4], 16
    $region17: #{_corr.1} parent=1 // pred_fallthru
      _
    %42 = sfence
    %s43 = sadd.s32 0, 0
    %s44 = smul.u32 2, %s43
    %p45 = scmp.lt.s32.totalorder %s44, 1
    %s46 = scalar_select %p45, %s44, 1
    %s47 = smul.addr %s46, 8
    %s48 = scalar_lea.vmem %s1, %s47
    %s49 = sadd.s32 0, 0
    %s50 = smul.u32 2, %s49
    %p51 = scmp.lt.s32.totalorder %s50, 1
    %s52 = scalar_select %p51, %s50, 1
    %s53 = smul.addr %s52, 8
    %s54 = scalar_lea.vmem %s2, %s53
    %s55 = sadd.s32 0, 0
    %s56 = smul.u32 2, %s55
    %p57 = scmp.lt.s32.totalorder %s56, 1
    %s58 = scalar_select %p57, %s56, 1
    %s59 = smul.addr %s58, 8
    %s60 = scalar_lea.vmem %s1, %s59
    %s61 = sadd.s32 0, 0
    %s62 = smul.u32 2, %s61
    %s63 = sadd.s32 0, 0
    %s64 = smul.u32 2, %s63
    %p65 = scmp.lt.s32.totalorder %s64, 1
    %s66 = scalar_select %p65, %s64, 1
    %s67 = smul.addr %s66, 8
    %s68 = scalar_lea.vmem %s2, %s67
    %s69 = sadd.s32 0, 0
    %s70 = smul.u32 2, %s69
    %p71 = scmp.eq.s32.totalorder 0, 0
    // Predicated region
    $region18: #{_corr.1} parent=1 // pred_check
      %p72 = pneg %p71
    $region19: #{_corr.1} parent=1 // pred_check_branch
      %74 = sbr.rel (%p72) target = $region21
    $region20: #{_corr.1} parent=1 // pred_region
      %75 = vst [vmem:[#allocation2] sm:$0xff] 0.0
      %76 = vst [vmem:[#allocation2 + $0x8] sm:$0xff] 0.0
      %77 = vst [vmem:[#allocation2 + $0x10] sm:$0xff] 0.0
      %78 = vst [vmem:[#allocation2 + $0x18] sm:$0xff] 0.0
      %79 = vst [vmem:[#allocation2 + $0x20] sm:$0xff] 0.0
    $region21: #{_corr.1} parent=1 // pred_fallthru
      _
    %s80 = sld [smem:[#allocation3]]
    %s81 = sld [smem:[#allocation3 + $0x1]]
    %v82 = vld [vmem:[%s60] sm:$0xff]
    %v83 = vld [vmem:[%s60 + $0x8] sm:$0xff]
    %v84 = vstv %s80
    %v85 = vsub.f32 %v82, %v84
    %v86 = vsub.f32 %v83, %v84
    %v87 = vld [vmem:[%s68] sm:$0xff]
    %v88 = vld [vmem:[%s68 + $0x8] sm:$0xff]
    %v89 = vstv %s81
    %v90 = vsub.f32 %v87, %v89
    %v91 = vsub.f32 %v88, %v89
    %v92 = vadd.f32 %v85, %v86
    %v93 = vadd.f32 %v92, 0.0
    %v94 = vadd.f32 %v90, %v91
    %v95 = vadd.f32 %v94, 0.0
    %v96 = vmul.f32 %v85, %v90
    %v97 = vmul.f32 %v86, %v91
    %v98 = vadd.f32 %v96, %v97
    %v99 = vadd.f32 %v98, 0.0
    %v100 = vmul.f32 %v85, %v85
    %v101 = vmul.f32 %v86, %v86
    %v102 = vadd.f32 %v100, %v101
    %v103 = vadd.f32 %v102, 0.0
    %v104 = vmul.f32 %v90, %v90
    %v105 = vmul.f32 %v91, %v91
    %v106 = vadd.f32 %v104, %v105
    %v107 = vadd.f32 %v106, 0.0
    %v108 = vld [vmem:[#allocation2] sm:$0xff]
    %v109 = vadd.f32 %v108, %v93
    %110 = vst [vmem:[#allocation2] sm:$0xff] %v109
    %s111 = scalar_lea.vmem [#allocation2], 8
    %v112 = vld [vmem:[%s111] sm:$0xff]
    %v113 = vadd.f32 %v112, %v95
    %114 = vst [vmem:[%s111] sm:$0xff] %v113
    %s115 = scalar_lea.vmem [#allocation2], 16
    %v116 = vld [vmem:[%s115] sm:$0xff]
    %v117 = vadd.f32 %v116, %v99
    %118 = vst [vmem:[%s115] sm:$0xff] %v117
    %s119 = scalar_lea.vmem [#allocation2], 24
    %v120 = vld [vmem:[%s119] sm:$0xff]
    %v121 = vadd.f32 %v120, %v103
    %122 = vst [vmem:[%s119] sm:$0xff] %v121
    %s123 = scalar_lea.vmem [#allocation2], 32
    %v124 = vld [vmem:[%s123] sm:$0xff]
    %v125 = vadd.f32 %v124, %v107
    %126 = vst [vmem:[%s123] sm:$0xff] %v125
    // Predicated region
    $region22: #{_corr.1} parent=1 // pred_check
      %p127 = pneg %p71
    $region23: #{_corr.1} parent=1 // pred_check_branch
      %129 = sbr.rel (%p127) target = $region25
    $region24: #{_corr.1} parent=1 // pred_region
      %v130 = vld [vmem:[#allocation2] sm:$0xff]
      %v131 = vld [vmem:[#allocation2 + $0x8] sm:$0xff]
      %v132 = vld [vmem:[#allocation2 + $0x10] sm:$0xff]
      %v133 = vld [vmem:[#allocation2 + $0x18] sm:$0xff]
      %v134 = vld [vmem:[#allocation2 + $0x20] sm:$0xff]
      %135 = vst [vmem:[%s3] sm:$0xff] %v130
      %136 = vst [vmem:[%s3 + $0x8] sm:$0xff] %v131
      %137 = vst [vmem:[%s3 + $0x10] sm:$0xff] %v132
      %138 = vst [vmem:[%s3 + $0x18] sm:$0xff] %v133
      %139 = vst [vmem:[%s3 + $0x20] sm:$0xff] %v134
    $region25: #{_corr.1} parent=1 // pred_fallthru
      _
    // Predicated region
    $region26: #{_corr.1} parent=1 // pred_check
      _
    $region27: #{_corr.1} parent=1 // pred_check_branch
      %141 = sbr.rel (0) target = $region29
    $region28: #{_corr.1} parent=1 // pred_region
      _
    $region29: #{_corr.1} parent=1 // pred_fallthru
      _
    // Predicated region
    $region30: #{_corr.1} parent=1 // pred_check
      _
    $region31: #{_corr.1} parent=1 // pred_check_branch
      %143 = sbr.rel (0) target = $region33
    $region32: #{_corr.1} parent=1 // pred_region
      _
    $region33: #{_corr.1} parent=1 // pred_fallthru
      _
    %144 = vsyncpa [#allocation4], 1

</llo_original>
